<compile_context>
chip_gen: v5e
topology: v5e:2x2
jax: 0.10.0
libtpu: 0.0.40
codegen_flags: <defaults>
</compile_context>

<pallas_src>
import functools

import jax
import jax.numpy as jnp
from jax.experimental import pallas as pl
from jax.experimental.pallas import tpu as pltpu


# --------------------------------------------------------------------------------------
# Kernel 1: QKV projection   y = x @ W_t + b   over (M, C) rows, column-tiled over 3C
# --------------------------------------------------------------------------------------
def _qkv_kernel(x_ref, w_ref, b_ref, o_ref, *, mxu_dtype):
    x = x_ref[...]
    w = w_ref[...]
    if mxu_dtype is not None:            # optional bf16 MXU feed (v6e / v7x)
        x = x.astype(mxu_dtype)
        w = w.astype(mxu_dtype)
    acc = jnp.dot(x, w, preferred_element_type=jnp.float32)
    o_ref[...] = (acc + b_ref[...].astype(jnp.float32)).astype(o_ref.dtype)


def qkv_projection(x2, w_t, b, *, tm=None, tn=None, mxu_dtype=None):
    """x2: (M, C).  w_t: (C, 3C) pre-transposed torch weight.  b: (1, 3C)."""
    M, C = x2.shape
    C3 = w_t.shape[1]
    if tm is None:
        tm = M if M <= 512 else 512          # big row tiles; ragged edge handled by cdiv grid
    if tn is None:
        # Tile the 3C axis so the resident weight block stays small (v7x: 64 MiB VMEM).
        tn = C3 if C3 <= 1536 else 1024
    grid = (pl.cdiv(M, tm), pl.cdiv(C3, tn))
    kern = functools.partial(_qkv_kernel, mxu_dtype=mxu_dtype)
    return pl.pallas_call(
        kern,
        out_shape=jax.ShapeDtypeStruct((M, C3), x2.dtype),
        grid=grid,
        in_specs=[
            pl.BlockSpec((tm, C), lambda i, j: (i, 0)),
            pl.BlockSpec((C, tn), lambda i, j: (0, j)),
            pl.BlockSpec((1, tn), lambda i, j: (0, j)),
        ],
        out_specs=pl.BlockSpec((tm, tn), lambda i, j: (i, j)),
        compiler_params=pltpu.CompilerParams(
            dimension_semantics=("parallel", "parallel")),
    )(x2, w_t, b)


# --------------------------------------------------------------------------------------
# Kernel 2: lane-dense fused  out = softmax(q*scale * k, axis=head_dim) * v
#   * blocks are (1, head_dim, HW): head_dim on sublanes, HW on lanes (lane-dense I/O)
#   * the frame roll of k / v is folded into the BlockSpec index_map
# --------------------------------------------------------------------------------------
def _attn_kernel(q_ref, k_ref, v_ref, o_ref, *, scale):
    q = q_ref[0]                              # (hd, HW): hd -> sublanes, HW -> lanes
    k = k_ref[0]
    v = v_ref[0]
    s = (q * scale) * k
    m = jnp.max(s, axis=0, keepdims=True)     # reduce over head_dim (sublane axis)
    e = jnp.exp(s - m)
    denom = jnp.sum(e, axis=0, keepdims=True)
    p = e * pl.reciprocal(denom, approx=True)  # divide moved onto the EUP slot
    o_ref[0] = (p * v).astype(o_ref.dtype)


def fused_cross_frame_softmax(q_t, k_r, v_t, *, scale, video_length):
    """q_t/k_r/v_t: (B*num_heads, head_dim, HW).  Returns same layout."""
    BN, hd, HW = q_t.shape
    vl = video_length

    def q_map(i):
        return (i, 0, 0)

    def kv_map(i):
        # torch.cat([x[:, :, -1:], x[:, :, :-1]], dim=2) == frame f reads source (f-1) mod vl,
        # applied on the flat (b*n*f) index (f is the innermost factor of size vl).
        f = i % vl
        return (i - f + (f + vl - 1) % vl, 0, 0)

    blk = (1, hd, HW)
    return pl.pallas_call(
        functools.partial(_attn_kernel, scale=scale),
        out_shape=jax.ShapeDtypeStruct((BN, hd, HW), q_t.dtype),
        grid=(BN,),
        in_specs=[
            pl.BlockSpec(blk, q_map),
            pl.BlockSpec(blk, kv_map),
            pl.BlockSpec(blk, kv_map),
        ],
        out_specs=pl.BlockSpec(blk, q_map),
        compiler_params=pltpu.CompilerParams(dimension_semantics=("parallel",)),
    )(q_t, k_r, v_t)


# --------------------------------------------------------------------------------------
# Full forward pass (glue in JAX; hot paths in the Pallas kernels above)
# --------------------------------------------------------------------------------------
def cross_frame_attention(hidden_states, w_qkv_t, b_qkv, *, num_heads, batch_size,
                          mxu_dtype=None):
    """hidden_states: (B, H, W, C) NHWC.  w_qkv_t: (C, 3C) pre-transposed.  b_qkv: (3C,)."""
    B, H, W, C = hidden_states.shape
    vl = B // batch_size
    nh = num_heads
    hd = C // nh
    scale = hd ** (-0.5)
    HW = H * W

    # ---- QKV linear (Pallas kernel 1) -------------------------------------------------
    x2 = hidden_states.reshape(B * HW, C)
    qkv = qkv_projection(x2, w_qkv_t, b_qkv.reshape(1, -1), mxu_dtype=mxu_dtype)  # (B*HW, 3C)

    # Single relayout pass into the lane-dense (head_dim, HW) layout kernel 2 wants.
    # (Replaces the old qkv permute + 2 rolls + 3 output-layout transposes.)
    qkv5 = qkv.reshape(B, HW, 3, nh, hd)
    q_t = jnp.transpose(qkv5[:, :, 0], (0, 2, 3, 1)).reshape(B * nh, hd, HW)  # q^T per head
    # k: the module's literal reshape (H,W,c) -> (hd, HW) is a C-order reinterpretation,
    # so it is a *free* reshape of the head-major natural layout (NOT a transpose).
    k_r = jnp.transpose(qkv5[:, :, 1], (0, 2, 1, 3)).reshape(B * nh, hd, HW)
    v_t = jnp.transpose(qkv5[:, :, 2], (0, 2, 3, 1)).reshape(B * nh, hd, HW)  # v^T per head

    # ---- fused scale*mul / softmax / mul (Pallas kernel 2, roll folded in) -------------
    xe = fused_cross_frame_softmax(q_t, k_r, v_t, scale=scale, video_length=vl)  # (B*nh, hd, HW)

    # ---- back to the module's literal output layout ------------------------------------
    # xe[(b,n,f), w, h]  ->  x[b, n, h, f, w]  (the reference 'bnhfw' layout)
    x = jnp.transpose(xe.reshape(batch_size, nh, vl, hd, HW), (0, 1, 4, 2, 3))
    # x.view(b, n, f, H, W, -1): literal C-order reinterpretation
    x6 = x.reshape(batch_size, nh, vl, H, W, hd)
    # rearrange 'b n f h w c -> (b f) h w (n c)'
    out = jnp.transpose(x6, (0, 2, 3, 4, 1, 5)).reshape(B, H, W, nh * hd)
    return out


# --------------------------------------------------------------------------------------
# Pure-JAX reference (mirrors the torch code literally) for correctness checking.
# --------------------------------------------------------------------------------------
def cross_frame_attention_ref(hidden_states, w_qkv, b_qkv, *, num_heads, batch_size):
    B, H, W, C = hidden_states.shape
    video_length = B // batch_size
    head_dim = C // num_heads
    scale = head_dim ** (-0.5)
    HW = H * W

    qkv = hidden_states.reshape(B * HW, C) @ w_qkv.T + b_qkv
    qkv = qkv.reshape(B, HW, 3, num_heads, head_dim)
    qkv = jnp.transpose(qkv, (2, 0, 3, 1, 4)).reshape(3, B * num_heads, HW, head_dim)
    q, k, v = qkv[0], qkv[1], qkv[2]

    q6 = q.reshape(batch_size, num_heads, video_length, H, W, head_dim)
    k6 = jnp.roll(k.reshape(batch_size, num_heads, video_length, H, W, head_dim), 1, axis=2)
    v6 = jnp.roll(v.reshape(batch_size, num_heads, video_length, H, W, head_dim), 1, axis=2)

    q5 = q6.reshape(batch_size, num_heads, video_length, HW, head_dim)
    k5 = k6.reshape(batch_size, num_heads, video_length, head_dim, HW)
    v5 = v6.reshape(batch_size, num_heads, video_length, HW, head_dim)

    attn = jnp.einsum('bnfhw,bnfwh->bnhfw', q5 * scale, k5)
    attn = jax.nn.softmax(attn, axis=-1)
    x = jnp.einsum('bnhfw,bnfhw->bnhfw', attn, v5)
    x6 = x.reshape(batch_size, num_heads, video_length, H, W, head_dim)
    return jnp.transpose(x6, (0, 2, 3, 4, 1, 5)).reshape(B, H, W, num_heads * head_dim)


if __name__ == "__main__":
    # Module hyper-parameters (small, consistent with the forward's requirements).
    input_dim = 32
    num_heads = 4          # head_dim = 8
    batch_size = 2
    max_fr = 2             # video_length
    B = batch_size * max_fr
    H = W = 8

    key = jax.random.PRNGKey(0)
    kx, kw, kb = jax.random.split(key, 3)

    hidden_states = jax.random.normal(kx, (B, H, W, input_dim), dtype=jnp.float32)
    # nn.Linear(input_dim, 3*input_dim): weight (3C, C), bias (3C,).
    w_qkv = jax.random.normal(kw, (3 * input_dim, input_dim), dtype=jnp.float32) * 0.02
    b_qkv = jax.random.normal(kb, (3 * input_dim,), dtype=jnp.float32) * 0.01

    # Pre-transpose the torch-layout weight ONCE at parameter-load time (not per call).
    w_qkv_t = jnp.asarray(w_qkv.T)

    fwd = jax.jit(functools.partial(
        cross_frame_attention, num_heads=num_heads, batch_size=batch_size))
    out = jax.block_until_ready(fwd(hidden_states, w_qkv_t, b_qkv))

    ref = cross_frame_attention_ref(
        hidden_states, w_qkv, b_qkv, num_heads=num_heads, batch_size=batch_size)
    assert out.shape == (B, H, W, input_dim)
    # approx reciprocal in the softmax denominator -> slightly looser-than-exact tolerance
    assert jnp.allclose(out, ref, atol=1e-3, rtol=1e-3), "mismatch vs JAX reference"

    print("KERNEL_OK")
</pallas_src>

<mosaic_0001>
module attributes {stable_mosaic.version = 11 : i64} {
  func.func @_qkv_kernel(%arg0: i32, %arg1: i32, %arg2: memref<256x32xf32, #tpu.memory_space<vmem>>, %arg3: memref<32x96xf32, #tpu.memory_space<vmem>>, %arg4: memref<1x96xf32, #tpu.memory_space<vmem>>, %arg5: memref<256x96xf32, #tpu.memory_space<vmem>>) attributes {dimension_semantics = [#tpu.dimension_semantics<parallel>, #tpu.dimension_semantics<parallel>], iteration_bounds = array<i64: 1, 1>, scalar_prefetch = 0 : i64, scratch_operands = 0 : i64, tpu.core_type = #tpu.core_type<tc>, window_params = [{transform_indices = @transform_0, window_bounds = array<i64: 256, 32>}, {transform_indices = @transform_1, window_bounds = array<i64: 32, 96>}, {transform_indices = @transform_2, window_bounds = array<i64: 1, 96>}, {transform_indices = @transform_3, window_bounds = array<i64: 256, 96>}]} {
    %c0 = arith.constant 0 : index
    %c0_0 = arith.constant 0 : index
    %0 = vector.load %arg2[%c0, %c0_0] : memref<256x32xf32, #tpu.memory_space<vmem>>, vector<256x32xf32>
    %c0_1 = arith.constant 0 : index
    %c0_2 = arith.constant 0 : index
    %1 = vector.load %arg3[%c0_1, %c0_2] : memref<32x96xf32, #tpu.memory_space<vmem>>, vector<32x96xf32>
    %cst = arith.constant dense<0.000000e+00> : vector<256x96xf32>
    %2 = tpu.matmul %0, %1, %cst {dimension_numbers = #tpu.dot_dimension_numbers<[1], [0], [0], [1], [0, 0, 1, 1], [], []>} : vector<256x32xf32>, vector<32x96xf32>, vector<256x96xf32> -> vector<256x96xf32>
    %c0_3 = arith.constant 0 : index
    %c0_4 = arith.constant 0 : index
    %3 = vector.load %arg4[%c0_3, %c0_4] : memref<1x96xf32, #tpu.memory_space<vmem>>, vector<1x96xf32>
    %4 = vector.broadcast %3 : vector<1x96xf32> to vector<256x96xf32>
    %5 = arith.addf %2, %4 : vector<256x96xf32>
    %c0_5 = arith.constant 0 : index
    %c0_6 = arith.constant 0 : index
    %6 = vector.load %arg5[%c0_5, %c0_6] : memref<256x96xf32, #tpu.memory_space<vmem>>, vector<256x96xf32>
    tpu.vector_store %arg5[%c0_5, %c0_6], %5 {strides = array<i32>} : memref<256x96xf32, #tpu.memory_space<vmem>>, vector<256x96xf32>,
    return
  }
  func.func @transform_0(%arg0: i32, %arg1: i32) -> (i32, i32) {
    %c0_i32 = arith.constant 0 : i32
    %c0_i32_0 = arith.constant 0 : i32
    return %arg0, %c0_i32 : i32, i32
  }
  func.func @transform_1(%arg0: i32, %arg1: i32) -> (i32, i32) {
    %c0_i32 = arith.constant 0 : i32
    %c0_i32_0 = arith.constant 0 : i32
    return %c0_i32, %arg1 : i32, i32
  }
  func.func @transform_2(%arg0: i32, %arg1: i32) -> (i32, i32) {
    %c0_i32 = arith.constant 0 : i32
    %c0_i32_0 = arith.constant 0 : i32
    return %c0_i32, %arg1 : i32, i32
  }
  func.func @transform_3(%arg0: i32, %arg1: i32) -> (i32, i32) {
    %c0_i32 = arith.constant 0 : i32
    return %arg0, %arg1 : i32, i32
  }
}

module attributes {stable_mosaic.version = 11 : i64} {
  func.func @_attn_kernel(%arg0: i32, %arg1: memref<1x8x64xf32, #tpu.memory_space<vmem>>, %arg2: memref<1x8x64xf32, #tpu.memory_space<vmem>>, %arg3: memref<1x8x64xf32, #tpu.memory_space<vmem>>, %arg4: memref<1x8x64xf32, #tpu.memory_space<vmem>>) attributes {dimension_semantics = [#tpu.dimension_semantics<parallel>], iteration_bounds = array<i64: 16>, scalar_prefetch = 0 : i64, scratch_operands = 0 : i64, tpu.core_type = #tpu.core_type<tc>, window_params = [{transform_indices = @transform_0, window_bounds = array<i64: 1, 8, 64>}, {transform_indices = @transform_1, window_bounds = array<i64: 1, 8, 64>}, {transform_indices = @transform_2, window_bounds = array<i64: 1, 8, 64>}, {transform_indices = @transform_3, window_bounds = array<i64: 1, 8, 64>}]} {
    %c0 = arith.constant 0 : index
    %c0_0 = arith.constant 0 : index
    %c0_1 = arith.constant 0 : index
    %0 = vector.load %arg1[%c0, %c0_0, %c0_1] : memref<1x8x64xf32, #tpu.memory_space<vmem>>, vector<1x8x64xf32>
    %1 = vector.shape_cast %0 : vector<1x8x64xf32> to vector<8x64xf32>
    %c0_2 = arith.constant 0 : index
    %c0_3 = arith.constant 0 : index
    %c0_4 = arith.constant 0 : index
    %2 = vector.load %arg2[%c0_2, %c0_3, %c0_4] : memref<1x8x64xf32, #tpu.memory_space<vmem>>, vector<1x8x64xf32>
    %3 = vector.shape_cast %2 : vector<1x8x64xf32> to vector<8x64xf32>
    %c0_5 = arith.constant 0 : index
    %c0_6 = arith.constant 0 : index
    %c0_7 = arith.constant 0 : index
    %4 = vector.load %arg3[%c0_5, %c0_6, %c0_7] : memref<1x8x64xf32, #tpu.memory_space<vmem>>, vector<1x8x64xf32>
    %5 = vector.shape_cast %4 : vector<1x8x64xf32> to vector<8x64xf32>
    %cst = arith.constant 0.353553385 : f32
    %6 = vector.broadcast %cst : f32 to vector<8x64xf32>
    %7 = arith.mulf %1, %6 : vector<8x64xf32>
    %8 = arith.mulf %7, %3 : vector<8x64xf32>
    %cst_8 = arith.constant dense<0xFF800000> : vector<64xf32>
    %9 = vector.multi_reduction <maximumf>, %8, %cst_8 [0] : vector<8x64xf32> to vector<64xf32>
    %10 = vector.shape_cast %9 : vector<64xf32> to vector<1x64xf32>
    %11 = vector.broadcast %10 : vector<1x64xf32> to vector<8x64xf32>
    %12 = arith.subf %8, %11 : vector<8x64xf32>
    %13 = math.exp %12 : vector<8x64xf32>
    %cst_9 = arith.constant dense<0.000000e+00> : vector<64xf32>
    %14 = vector.multi_reduction <add>, %13, %cst_9 [0] : vector<8x64xf32> to vector<64xf32>
    %15 = vector.shape_cast %14 : vector<64xf32> to vector<1x64xf32>
    %16 = tpu.reciprocal %15 {approx = true} : vector<1x64xf32> -> vector<1x64xf32>
    %17 = vector.broadcast %16 : vector<1x64xf32> to vector<8x64xf32>
    %18 = arith.mulf %13, %17 : vector<8x64xf32>
    %19 = arith.mulf %18, %5 : vector<8x64xf32>
    %c0_10 = arith.constant 0 : index
    %c0_11 = arith.constant 0 : index
    %c0_12 = arith.constant 0 : index
    %20 = vector.load %arg4[%c0_10, %c0_11, %c0_12] : memref<1x8x64xf32, #tpu.memory_space<vmem>>, vector<1x8x64xf32>
    %21 = vector.shape_cast %20 : vector<1x8x64xf32> to vector<8x64xf32>
    %22 = vector.shape_cast %19 : vector<8x64xf32> to vector<1x8x64xf32>
    tpu.vector_store %arg4[%c0_10, %c0_11, %c0_12], %22 {strides = array<i32>} : memref<1x8x64xf32, #tpu.memory_space<vmem>>, vector<1x8x64xf32>,
    return
  }
  func.func @transform_0(%arg0: i32) -> (i32, i32, i32) {
    %c0_i32 = arith.constant 0 : i32
    %c0_i32_0 = arith.constant 0 : i32
    %c0_i32_1 = arith.constant 0 : i32
    return %arg0, %c0_i32, %c0_i32_0 : i32, i32, i32
  }
  func.func @transform_1(%arg0: i32) -> (i32, i32, i32) {
    %c2_i32 = arith.constant 2 : i32
    %c0_i32 = arith.constant 0 : i32
    %0 = arith.cmpi eq, %c2_i32, %c0_i32 : i32
    %c1_i32 = arith.constant 1 : i32
    %1 = arith.select %0, %c1_i32, %c2_i32 : i32
    %2 = arith.remsi %arg0, %1 : i32
    %c0_i32_0 = arith.constant 0 : i32
    %3 = arith.cmpi ne, %2, %c0_i32_0 : i32
    %c0_i32_1 = arith.constant 0 : i32
    %4 = arith.cmpi slt, %2, %c0_i32_1 : i32
    %c0_i32_2 = arith.constant 0 : i32
    %5 = arith.cmpi slt, %1, %c0_i32_2 : i32
    %6 = arith.xori %4, %5 : i1
    %7 = arith.andi %6, %3 : i1
    %8 = arith.addi %2, %1 : i32
    %9 = arith.select %7, %8, %2 : i32
    %10 = arith.subi %arg0, %9 : i32
    %c2_i32_3 = arith.constant 2 : i32
    %11 = arith.addi %9, %c2_i32_3 : i32
    %c1_i32_4 = arith.constant 1 : i32
    %12 = arith.subi %11, %c1_i32_4 : i32
    %c2_i32_5 = arith.constant 2 : i32
    %c0_i32_6 = arith.constant 0 : i32
    %13 = arith.cmpi eq, %c2_i32_5, %c0_i32_6 : i32
    %c1_i32_7 = arith.constant 1 : i32
    %14 = arith.select %13, %c1_i32_7, %c2_i32_5 : i32
    %15 = arith.remsi %12, %14 : i32
    %c0_i32_8 = arith.constant 0 : i32
    %16 = arith.cmpi ne, %15, %c0_i32_8 : i32
    %c0_i32_9 = arith.constant 0 : i32
    %17 = arith.cmpi slt, %15, %c0_i32_9 : i32
    %c0_i32_10 = arith.constant 0 : i32
    %18 = arith.cmpi slt, %14, %c0_i32_10 : i32
    %19 = arith.xori %17, %18 : i1
    %20 = arith.andi %19, %16 : i1
    %21 = arith.addi %15, %14 : i32
    %22 = arith.select %20, %21, %15 : i32
    %23 = arith.addi %10, %22 : i32
    %c0_i32_11 = arith.constant 0 : i32
    %c0_i32_12 = arith.constant 0 : i32
    %c0_i32_13 = arith.constant 0 : i32
    return %23, %c0_i32_11, %c0_i32_12 : i32, i32, i32
  }
  func.func @transform_2(%arg0: i32) -> (i32, i32, i32) {
    %c2_i32 = arith.constant 2 : i32
    %c0_i32 = arith.constant 0 : i32
    %0 = arith.cmpi eq, %c2_i32, %c0_i32 : i32
    %c1_i32 = arith.constant 1 : i32
    %1 = arith.select %0, %c1_i32, %c2_i32 : i32
    %2 = arith.remsi %arg0, %1 : i32
    %c0_i32_0 = arith.constant 0 : i32
    %3 = arith.cmpi ne, %2, %c0_i32_0 : i32
    %c0_i32_1 = arith.constant 0 : i32
    %4 = arith.cmpi slt, %2, %c0_i32_1 : i32
    %c0_i32_2 = arith.constant 0 : i32
    %5 = arith.cmpi slt, %1, %c0_i32_2 : i32
    %6 = arith.xori %4, %5 : i1
    %7 = arith.andi %6, %3 : i1
    %8 = arith.addi %2, %1 : i32
    %9 = arith.select %7, %8, %2 : i32
    %10 = arith.subi %arg0, %9 : i32
    %c2_i32_3 = arith.constant 2 : i32
    %11 = arith.addi %9, %c2_i32_3 : i32
    %c1_i32_4 = arith.constant 1 : i32
    %12 = arith.subi %11, %c1_i32_4 : i32
    %c2_i32_5 = arith.constant 2 : i32
    %c0_i32_6 = arith.constant 0 : i32
    %13 = arith.cmpi eq, %c2_i32_5, %c0_i32_6 : i32
    %c1_i32_7 = arith.constant 1 : i32
    %14 = arith.select %13, %c1_i32_7, %c2_i32_5 : i32
    %15 = arith.remsi %12, %14 : i32
    %c0_i32_8 = arith.constant 0 : i32
    %16 = arith.cmpi ne, %15, %c0_i32_8 : i32
    %c0_i32_9 = arith.constant 0 : i32
    %17 = arith.cmpi slt, %15, %c0_i32_9 : i32
    %c0_i32_10 = arith.constant 0 : i32
    %18 = arith.cmpi slt, %14, %c0_i32_10 : i32
    %19 = arith.xori %17, %18 : i1
    %20 = arith.andi %19, %16 : i1
    %21 = arith.addi %15, %14 : i32
    %22 = arith.select %20, %21, %15 : i32
    %23 = arith.addi %10, %22 : i32
    %c0_i32_11 = arith.constant 0 : i32
    %c0_i32_12 = arith.constant 0 : i32
    %c0_i32_13 = arith.constant 0 : i32
    return %23, %c0_i32_11, %c0_i32_12 : i32, i32, i32
  }
  func.func @transform_3(%arg0: i32) -> (i32, i32, i32) {
    %c0_i32 = arith.constant 0 : i32
    %c0_i32_0 = arith.constant 0 : i32
    %c0_i32_1 = arith.constant 0 : i32
    return %arg0, %c0_i32, %c0_i32_0 : i32, i32, i32
  }
}

</mosaic_0001>

<llo_original>
// kernel: cross_frame_attention.3
$region0: #{cross_frame_attention.3}
  #allocation0 [shape = 'u32[]', space=smem, size = 0x4, offset = 0x4, fixed_abs, tag = 'smem constant byte address 0x4 - core index']
  #allocation1 [shape = 'u32[72,128]{1,0:T(1,128)}', space=vmem, size = 0x9000, scoped, tag = 'internal scratch']
  %s0 = inlined_call_operand.vmem [shape: f32[16,8,64], index: 0, kind: input, shape index: {}]
  %s1 = inlined_call_operand.vmem [shape: f32[16,8,64], index: 1, kind: input, shape index: {}]
  %s2 = inlined_call_operand.vmem [shape: f32[16,8,64], index: 2, kind: input, shape index: {}]
  %s3 = inlined_call_operand.vmem [shape: f32[16,8,64], index: 3, kind: output, shape index: {}]
  %s4 = sld [smem:[#allocation0]]
  $region45: #{cross_frame_attention.3} parent=0
    _
  %s6 = ssub.s32 1, %s4
  %s7 = scalar_select 0, %s6, %s4
  loop: start=0, step=1, limit=18
  $region2: #{cross_frame_attention.3} parent=0 // loop_pre_header
    _
  $region3: #{cross_frame_attention.3} parent=0 // loop_header
    %s9 = sphi 0, %s13
    %p10 = scmp.ge.s32.totalorder %s9, 18
    %s19 = sphi 0, %s21
    %s22 = sphi 0, %s19
    %s23 = sphi 0, %s22
    %s39 = sphi 0, %s23
    %s99 = sphi 0, %s101
    %s102 = sphi 0, %s99
    %s103 = sphi 0, %s102
    %s119 = sphi 0, %s103
    %s179 = sphi 0, %s181
    %s182 = sphi 0, %s179
    %s183 = sphi 0, %s182
    %s199 = sphi 0, %s183
    %s205 = sphi 0, %s207
    %s208 = sphi 0, %s205
    %s209 = sphi 0, %s208
    %s225 = sphi 0, %s209
  $region4: #{cross_frame_attention.3} parent=0 // loop_header_branch
    %12 = sbr.rel (%p10) target = $region8
  $region5: #{cross_frame_attention.3} parent=0 // loop_body
    %s14 = ssub.s32 %s9, 1
    %s15 = ssub.s32 %s9, 2
    %s16 = sadd.s32 %s9, 1
    %s17 = ssub.s32 %s9, %s16
    %p18 = scmp.eq.s32.totalorder %s17, 0
    %s20 = sadd.s32 %s19, 1
    %s21 = scalar_select %p18, %s19, %s20
    %p24 = pneg %p18
    %p25 = scmp.eq.s32.totalorder %s9, 15
    %p26 = por %p24, %p25
    %p27 = scmp.ne.s32.totalorder %s19, %s22
    %p28 = scmp.eq.s32.totalorder %s9, 0
    %p29 = por %p27, %p28
    %p30 = scmp.ne.s32.totalorder %s19, %s22
    %p31 = scmp.eq.s32.totalorder %s14, 15
    %p32 = por %p30, %p31
    %p33 = scmp.ne.s32.totalorder %s22, %s23
    %p34 = scmp.eq.s32.totalorder %s14, 0
    %p35 = por %p33, %p34
    %p36 = scmp.ne.s32.totalorder %s22, %s23
    %p37 = scmp.eq.s32.totalorder %s15, 15
    %p38 = por %p36, %p37
    %p40 = scmp.ne.s32.totalorder %s23, %s39
    %p41 = scmp.eq.s32.totalorder %s15, 0
    %p42 = por %p40, %p41
    %p43 = scmp.lt.s32.totalorder %s9, 0
    %s44 = ssub.s32 0, %s9
    %s45 = scalar_select %p43, %s44, %s9
    %s46 = sand.u32 %s45, 1
    %s47 = ssub.s32 0, %s46
    %s48 = scalar_select %p43, %s47, %s46
    %p49 = scmp.ne.s32.totalorder %s48, 0
    %p50 = scmp.lt.s32.totalorder %s48, 0
    %p51 = pnand %p50, %p49
    %p52 = pneg %p51
    %s53 = sadd.s32 %s48, 2
    %s54 = scalar_select %p52, %s53, %s48
    %s55 = ssub.s32 %s9, %s54
    %s56 = sadd.s32 %s54, 1
    %p57 = scmp.lt.s32.totalorder %s56, 0
    %s58 = ssub.s32 0, %s56
    %s59 = scalar_select %p57, %s58, %s56
    %s60 = sand.u32 %s59, 1
    %s61 = ssub.s32 0, %s60
    %s62 = scalar_select %p57, %s61, %s60
    %p63 = scmp.ne.s32.totalorder %s62, 0
    %p64 = scmp.lt.s32.totalorder %s62, 0
    %p65 = pnand %p64, %p63
    %p66 = pneg %p65
    %s67 = sadd.s32 %s62, 2
    %s68 = scalar_select %p66, %s67, %s62
    %s69 = sadd.s32 %s55, %s68
    %p70 = scmp.lt.s32.totalorder %s16, 0
    %s71 = ssub.s32 0, %s16
    %s72 = scalar_select %p70, %s71, %s16
    %s73 = sand.u32 %s72, 1
    %s74 = ssub.s32 0, %s73
    %s75 = scalar_select %p70, %s74, %s73
    %p76 = scmp.ne.s32.totalorder %s75, 0
    %p77 = scmp.lt.s32.totalorder %s75, 0
    %p78 = pnand %p77, %p76
    %p79 = pneg %p78
    %s80 = sadd.s32 %s75, 2
    %s81 = scalar_select %p79, %s80, %s75
    %s82 = ssub.s32 %s16, %s81
    %s83 = sadd.s32 %s81, 1
    %p84 = scmp.lt.s32.totalorder %s83, 0
    %s85 = ssub.s32 0, %s83
    %s86 = scalar_select %p84, %s85, %s83
    %s87 = sand.u32 %s86, 1
    %s88 = ssub.s32 0, %s87
    %s89 = scalar_select %p84, %s88, %s87
    %p90 = scmp.ne.s32.totalorder %s89, 0
    %p91 = scmp.lt.s32.totalorder %s89, 0
    %p92 = pnand %p91, %p90
    %p93 = pneg %p92
    %s94 = sadd.s32 %s89, 2
    %s95 = scalar_select %p93, %s94, %s89
    %s96 = sadd.s32 %s82, %s95
    %s97 = ssub.s32 %s69, %s96
    %p98 = scmp.eq.s32.totalorder %s97, 0
    %s100 = sadd.s32 %s99, 1
    %s101 = scalar_select %p98, %s99, %s100
    %p104 = pneg %p98
    %p105 = scmp.eq.s32.totalorder %s9, 15
    %p106 = por %p104, %p105
    %p107 = scmp.ne.s32.totalorder %s99, %s102
    %p108 = scmp.eq.s32.totalorder %s9, 0
    %p109 = por %p107, %p108
    %p110 = scmp.ne.s32.totalorder %s99, %s102
    %p111 = scmp.eq.s32.totalorder %s14, 15
    %p112 = por %p110, %p111
    %p113 = scmp.ne.s32.totalorder %s102, %s103
    %p114 = scmp.eq.s32.totalorder %s14, 0
    %p115 = por %p113, %p114
    %p116 = scmp.ne.s32.totalorder %s102, %s103
    %p117 = scmp.eq.s32.totalorder %s15, 15
    %p118 = por %p116, %p117
    %p120 = scmp.ne.s32.totalorder %s103, %s119
    %p121 = scmp.eq.s32.totalorder %s15, 0
    %p122 = por %p120, %p121
    %p123 = scmp.lt.s32.totalorder %s9, 0
    %s124 = ssub.s32 0, %s9
    %s125 = scalar_select %p123, %s124, %s9
    %s126 = sand.u32 %s125, 1
    %s127 = ssub.s32 0, %s126
    %s128 = scalar_select %p123, %s127, %s126
    %p129 = scmp.ne.s32.totalorder %s128, 0
    %p130 = scmp.lt.s32.totalorder %s128, 0
    %p131 = pnand %p130, %p129
    %p132 = pneg %p131
    %s133 = sadd.s32 %s128, 2
    %s134 = scalar_select %p132, %s133, %s128
    %s135 = ssub.s32 %s9, %s134
    %s136 = sadd.s32 %s134, 1
    %p137 = scmp.lt.s32.totalorder %s136, 0
    %s138 = ssub.s32 0, %s136
    %s139 = scalar_select %p137, %s138, %s136
    %s140 = sand.u32 %s139, 1
    %s141 = ssub.s32 0, %s140
    %s142 = scalar_select %p137, %s141, %s140
    %p143 = scmp.ne.s32.totalorder %s142, 0
    %p144 = scmp.lt.s32.totalorder %s142, 0
    %p145 = pnand %p144, %p143
    %p146 = pneg %p145
    %s147 = sadd.s32 %s142, 2
    %s148 = scalar_select %p146, %s147, %s142
    %s149 = sadd.s32 %s135, %s148
    %p150 = scmp.lt.s32.totalorder %s16, 0
    %s151 = ssub.s32 0, %s16
    %s152 = scalar_select %p150, %s151, %s16
    %s153 = sand.u32 %s152, 1
    %s154 = ssub.s32 0, %s153
    %s155 = scalar_select %p150, %s154, %s153
    %p156 = scmp.ne.s32.totalorder %s155, 0
    %p157 = scmp.lt.s32.totalorder %s155, 0
    %p158 = pnand %p157, %p156
    %p159 = pneg %p158
    %s160 = sadd.s32 %s155, 2
    %s161 = scalar_select %p159, %s160, %s155
    %s162 = ssub.s32 %s16, %s161
    %s163 = sadd.s32 %s161, 1
    %p164 = scmp.lt.s32.totalorder %s163, 0
    %s165 = ssub.s32 0, %s163
    %s166 = scalar_select %p164, %s165, %s163
    %s167 = sand.u32 %s166, 1
    %s168 = ssub.s32 0, %s167
    %s169 = scalar_select %p164, %s168, %s167
    %p170 = scmp.ne.s32.totalorder %s169, 0
    %p171 = scmp.lt.s32.totalorder %s169, 0
    %p172 = pnand %p171, %p170
    %p173 = pneg %p172
    %s174 = sadd.s32 %s169, 2
    %s175 = scalar_select %p173, %s174, %s169
    %s176 = sadd.s32 %s162, %s175
    %s177 = ssub.s32 %s149, %s176
    %p178 = scmp.eq.s32.totalorder %s177, 0
    %s180 = sadd.s32 %s179, 1
    %s181 = scalar_select %p178, %s179, %s180
    %p184 = pneg %p178
    %p185 = scmp.eq.s32.totalorder %s9, 15
    %p186 = por %p184, %p185
    %p187 = scmp.ne.s32.totalorder %s179, %s182
    %p188 = scmp.eq.s32.totalorder %s9, 0
    %p189 = por %p187, %p188
    %p190 = scmp.ne.s32.totalorder %s179, %s182
    %p191 = scmp.eq.s32.totalorder %s14, 15
    %p192 = por %p190, %p191
    %p193 = scmp.ne.s32.totalorder %s182, %s183
    %p194 = scmp.eq.s32.totalorder %s14, 0
    %p195 = por %p193, %p194
    %p196 = scmp.ne.s32.totalorder %s182, %s183
    %p197 = scmp.eq.s32.totalorder %s15, 15
    %p198 = por %p196, %p197
    %p200 = scmp.ne.s32.totalorder %s183, %s199
    %p201 = scmp.eq.s32.totalorder %s15, 0
    %p202 = por %p200, %p201
    %s203 = ssub.s32 %s9, %s16
    %p204 = scmp.eq.s32.totalorder %s203, 0
    %s206 = sadd.s32 %s205, 1
    %s207 = scalar_select %p204, %s205, %s206
    %p210 = pneg %p204
    %p211 = scmp.eq.s32.totalorder %s9, 15
    %p212 = por %p210, %p211
    %p213 = scmp.ne.s32.totalorder %s205, %s208
    %p214 = scmp.eq.s32.totalorder %s9, 0
    %p215 = por %p213, %p214
    %p216 = scmp.ne.s32.totalorder %s205, %s208
    %p217 = scmp.eq.s32.totalorder %s14, 15
    %p218 = por %p216, %p217
    %p219 = scmp.ne.s32.totalorder %s208, %s209
    %p220 = scmp.eq.s32.totalorder %s14, 0
    %p221 = por %p219, %p220
    %p222 = scmp.ne.s32.totalorder %s208, %s209
    %p223 = scmp.eq.s32.totalorder %s15, 15
    %p224 = por %p222, %p223
    %p226 = scmp.ne.s32.totalorder %s209, %s225
    %p227 = scmp.eq.s32.totalorder %s15, 0
    %p228 = por %p226, %p227
    %p229 = scmp.le.s32.totalorder 1, %s9
    %p230 = scmp.lt.s32.totalorder %s9, 17
    %p231 = pnand %p229, %p230
    %p232 = pneg %p231
    // Predicated region
    $region9: #{cross_frame_attention.3} parent=5 // pred_check
      _
    $region10: #{cross_frame_attention.3} parent=5 // pred_check_branch
      %234 = sbr.rel (%p231) target = $region12
    $region11: #{cross_frame_attention.3} parent=5 // pred_region
      %s235 = ssub.s32 %s9, 1
    $region12: #{cross_frame_attention.3} parent=5 // pred_fallthru
      _
    %p236 = scmp.lt.s32.totalorder %s9, 16
    // Predicated region
    $region13: #{cross_frame_attention.3} parent=5 // pred_check
      %p237 = pneg %p236
    $region14: #{cross_frame_attention.3} parent=5 // pred_check_branch
      %239 = sbr.rel (%p237) target = $region16
    $region15: #{cross_frame_attention.3} parent=5 // pred_region
      // Predicated region
      $region17: #{cross_frame_attention.3} parent=15 // pred_check
        %p240 = pneg %p29
      $region18: #{cross_frame_attention.3} parent=15 // pred_check_branch
        %242 = sbr.rel (%p240) target = $region20
      $region19: #{cross_frame_attention.3} parent=15 // pred_region
        %p243 = scmp.lt.s32.totalorder %s9, 15
        %s244 = scalar_select %p243, %s9, 15
        %s245 = smul.addr %s244, 8
        %s246 = scalar_lea.vmem %s0, %s245
      $region20: #{cross_frame_attention.3} parent=15 // pred_fallthru
        _
      // Predicated region
      $region21: #{cross_frame_attention.3} parent=15 // pred_check
        %p247 = pneg %p109
      $region22: #{cross_frame_attention.3} parent=15 // pred_check_branch
        %249 = sbr.rel (%p247) target = $region24
      $region23: #{cross_frame_attention.3} parent=15 // pred_region
        %p250 = scmp.lt.s32.totalorder %s9, 0
        %s251 = ssub.s32 0, %s9
        %s252 = scalar_select %p250, %s251, %s9
        %s253 = sand.u32 %s252, 1
        %s254 = ssub.s32 0, %s253
        %s255 = scalar_select %p250, %s254, %s253
        %p256 = scmp.ne.s32.totalorder %s255, 0
        %p257 = scmp.lt.s32.totalorder %s255, 0
        %p258 = pnand %p257, %p256
        %p259 = pneg %p258
        %s260 = sadd.s32 %s255, 2
        %s261 = scalar_select %p259, %s260, %s255
        %s262 = ssub.s32 %s9, %s261
        %s263 = sadd.s32 %s261, 1
        %p264 = scmp.lt.s32.totalorder %s263, 0
        %s265 = ssub.s32 0, %s263
        %s266 = scalar_select %p264, %s265, %s263
        %s267 = sand.u32 %s266, 1
        %s268 = ssub.s32 0, %s267
        %s269 = scalar_select %p264, %s268, %s267
        %p270 = scmp.ne.s32.totalorder %s269, 0
        %p271 = scmp.lt.s32.totalorder %s269, 0
        %p272 = pnand %p271, %p270
        %p273 = pneg %p272
        %s274 = sadd.s32 %s269, 2
        %s275 = scalar_select %p273, %s274, %s269
        %s276 = sadd.s32 %s262, %s275
        %p277 = scmp.lt.s32.totalorder %s276, 15
        %s278 = scalar_select %p277, %s276, 15
        %s279 = smul.addr %s278, 8
        %s280 = scalar_lea.vmem %s1, %s279
        %p281 = scmp.lt.s32.totalorder %s9, 0
        %s282 = ssub.s32 0, %s9
        %s283 = scalar_select %p281, %s282, %s9
        %s284 = sand.u32 %s283, 1
        %s285 = ssub.s32 0, %s284
        %s286 = scalar_select %p281, %s285, %s284
        %p287 = scmp.ne.s32.totalorder %s286, 0
        %p288 = scmp.lt.s32.totalorder %s286, 0
        %p289 = pnand %p288, %p287
        %p290 = pneg %p289
        %s291 = sadd.s32 %s286, 2
        %s292 = scalar_select %p290, %s291, %s286
        %s293 = ssub.s32 %s9, %s292
        %s294 = sadd.s32 %s292, 1
        %p295 = scmp.lt.s32.totalorder %s294, 0
        %s296 = ssub.s32 0, %s294
        %s297 = scalar_select %p295, %s296, %s294
        %s298 = sand.u32 %s297, 1
        %s299 = ssub.s32 0, %s298
        %s300 = scalar_select %p295, %s299, %s298
        %p301 = scmp.ne.s32.totalorder %s300, 0
        %p302 = scmp.lt.s32.totalorder %s300, 0
        %p303 = pnand %p302, %p301
        %p304 = pneg %p303
        %s305 = sadd.s32 %s300, 2
        %s306 = scalar_select %p304, %s305, %s300
        %s307 = sadd.s32 %s293, %s306
      $region24: #{cross_frame_attention.3} parent=15 // pred_fallthru
        _
      // Predicated region
      $region25: #{cross_frame_attention.3} parent=15 // pred_check
        %p308 = pneg %p189
      $region26: #{cross_frame_attention.3} parent=15 // pred_check_branch
        %310 = sbr.rel (%p308) target = $region28
      $region27: #{cross_frame_attention.3} parent=15 // pred_region
        %p311 = scmp.lt.s32.totalorder %s9, 0
        %s312 = ssub.s32 0, %s9
        %s313 = scalar_select %p311, %s312, %s9
        %s314 = sand.u32 %s313, 1
        %s315 = ssub.s32 0, %s314
        %s316 = scalar_select %p311, %s315, %s314
        %p317 = scmp.ne.s32.totalorder %s316, 0
        %p318 = scmp.lt.s32.totalorder %s316, 0
        %p319 = pnand %p318, %p317
        %p320 = pneg %p319
        %s321 = sadd.s32 %s316, 2
        %s322 = scalar_select %p320, %s321, %s316
        %s323 = ssub.s32 %s9, %s322
        %s324 = sadd.s32 %s322, 1
        %p325 = scmp.lt.s32.totalorder %s324, 0
        %s326 = ssub.s32 0, %s324
        %s327 = scalar_select %p325, %s326, %s324
        %s328 = sand.u32 %s327, 1
        %s329 = ssub.s32 0, %s328
        %s330 = scalar_select %p325, %s329, %s328
        %p331 = scmp.ne.s32.totalorder %s330, 0
        %p332 = scmp.lt.s32.totalorder %s330, 0
        %p333 = pnand %p332, %p331
        %p334 = pneg %p333
        %s335 = sadd.s32 %s330, 2
        %s336 = scalar_select %p334, %s335, %s330
        %s337 = sadd.s32 %s323, %s336
        %p338 = scmp.lt.s32.totalorder %s337, 15
        %s339 = scalar_select %p338, %s337, 15
        %s340 = smul.addr %s339, 8
        %s341 = scalar_lea.vmem %s2, %s340
        %p342 = scmp.lt.s32.totalorder %s9, 0
        %s343 = ssub.s32 0, %s9
        %s344 = scalar_select %p342, %s343, %s9
        %s345 = sand.u32 %s344, 1
        %s346 = ssub.s32 0, %s345
        %s347 = scalar_select %p342, %s346, %s345
        %p348 = scmp.ne.s32.totalorder %s347, 0
        %p349 = scmp.lt.s32.totalorder %s347, 0
        %p350 = pnand %p349, %p348
        %p351 = pneg %p350
        %s352 = sadd.s32 %s347, 2
        %s353 = scalar_select %p351, %s352, %s347
        %s354 = ssub.s32 %s9, %s353
        %s355 = sadd.s32 %s353, 1
        %p356 = scmp.lt.s32.totalorder %s355, 0
        %s357 = ssub.s32 0, %s355
        %s358 = scalar_select %p356, %s357, %s355
        %s359 = sand.u32 %s358, 1
        %s360 = ssub.s32 0, %s359
        %s361 = scalar_select %p356, %s360, %s359
        %p362 = scmp.ne.s32.totalorder %s361, 0
        %p363 = scmp.lt.s32.totalorder %s361, 0
        %p364 = pnand %p363, %p362
        %p365 = pneg %p364
        %s366 = sadd.s32 %s361, 2
        %s367 = scalar_select %p365, %s366, %s361
        %s368 = sadd.s32 %s354, %s367
      $region28: #{cross_frame_attention.3} parent=15 // pred_fallthru
        _
    $region16: #{cross_frame_attention.3} parent=5 // pred_fallthru
      _
    %p369 = scmp.le.s32.totalorder 1, %s9
    %p370 = scmp.lt.s32.totalorder %s9, 17
    %p371 = pnand %p369, %p370
    %p372 = pneg %p371
    // Predicated region
    $region29: #{cross_frame_attention.3} parent=5 // pred_check
      _
    $region30: #{cross_frame_attention.3} parent=5 // pred_check_branch
      %374 = sbr.rel (%p371) target = $region32
    $region31: #{cross_frame_attention.3} parent=5 // pred_region
      %s375 = ssub.s32 %s9, 1
      %p376 = scmp.lt.s32.totalorder %s14, 15
      %s377 = scalar_select %p376, %s14, 15
      %s378 = smul.addr %s377, 8
      %s379 = scalar_lea.vmem %s0, %s378
      %p380 = pneg %p35
      %p381 = pneg %p32
      %p382 = scmp.lt.s32.totalorder %s14, 0
      %s383 = ssub.s32 0, %s14
      %s384 = scalar_select %p382, %s383, %s14
      %s385 = sand.u32 %s384, 1
      %s386 = ssub.s32 0, %s385
      %s387 = scalar_select %p382, %s386, %s385
      %p388 = scmp.ne.s32.totalorder %s387, 0
      %p389 = scmp.lt.s32.totalorder %s387, 0
      %p390 = pnand %p389, %p388
      %p391 = pneg %p390
      %s392 = sadd.s32 %s387, 2
      %s393 = scalar_select %p391, %s392, %s387
      %s394 = ssub.s32 %s14, %s393
      %s395 = sadd.s32 %s393, 1
      %p396 = scmp.lt.s32.totalorder %s395, 0
      %s397 = ssub.s32 0, %s395
      %s398 = scalar_select %p396, %s397, %s395
      %s399 = sand.u32 %s398, 1
      %s400 = ssub.s32 0, %s399
      %s401 = scalar_select %p396, %s400, %s399
      %p402 = scmp.ne.s32.totalorder %s401, 0
      %p403 = scmp.lt.s32.totalorder %s401, 0
      %p404 = pnand %p403, %p402
      %p405 = pneg %p404
      %s406 = sadd.s32 %s401, 2
      %s407 = scalar_select %p405, %s406, %s401
      %s408 = sadd.s32 %s394, %s407
      %p409 = scmp.lt.s32.totalorder %s408, 15
      %s410 = scalar_select %p409, %s408, 15
      %s411 = smul.addr %s410, 8
      %s412 = scalar_lea.vmem %s1, %s411
      %p413 = pneg %p115
      %p414 = pneg %p112
      %p415 = scmp.lt.s32.totalorder %s14, 0
      %s416 = ssub.s32 0, %s14
      %s417 = scalar_select %p415, %s416, %s14
      %s418 = sand.u32 %s417, 1
      %s419 = ssub.s32 0, %s418
      %s420 = scalar_select %p415, %s419, %s418
      %p421 = scmp.ne.s32.totalorder %s420, 0
      %p422 = scmp.lt.s32.totalorder %s420, 0
      %p423 = pnand %p422, %p421
      %p424 = pneg %p423
      %s425 = sadd.s32 %s420, 2
      %s426 = scalar_select %p424, %s425, %s420
      %s427 = ssub.s32 %s14, %s426
      %s428 = sadd.s32 %s426, 1
      %p429 = scmp.lt.s32.totalorder %s428, 0
      %s430 = ssub.s32 0, %s428
      %s431 = scalar_select %p429, %s430, %s428
      %s432 = sand.u32 %s431, 1
      %s433 = ssub.s32 0, %s432
      %s434 = scalar_select %p429, %s433, %s432
      %p435 = scmp.ne.s32.totalorder %s434, 0
      %p436 = scmp.lt.s32.totalorder %s434, 0
      %p437 = pnand %p436, %p435
      %p438 = pneg %p437
      %s439 = sadd.s32 %s434, 2
      %s440 = scalar_select %p438, %s439, %s434
      %s441 = sadd.s32 %s427, %s440
      %p442 = scmp.lt.s32.totalorder %s441, 15
      %s443 = scalar_select %p442, %s441, 15
      %s444 = smul.addr %s443, 8
      %s445 = scalar_lea.vmem %s2, %s444
      %p446 = pneg %p195
      %p447 = pneg %p192
      %p448 = pneg %p221
      %p449 = pneg %p218
      %p450 = scmp.lt.s32.totalorder %s14, 15
      %s451 = scalar_select %p450, %s14, 15
      %s452 = smul.addr %s451, 8
      %s453 = scalar_lea.vmem %s3, %s452
      %p454 = scmp.lt.s32.totalorder %s14, 15
      %s455 = scalar_select %p454, %s14, 15
      %s456 = smul.addr %s455, 8
      %s457 = scalar_lea.vmem %s0, %s456
      %p458 = scmp.lt.s32.totalorder %s14, 0
      %s459 = ssub.s32 0, %s14
      %s460 = scalar_select %p458, %s459, %s14
      %s461 = sand.u32 %s460, 1
      %s462 = ssub.s32 0, %s461
      %s463 = scalar_select %p458, %s462, %s461
      %p464 = scmp.ne.s32.totalorder %s463, 0
      %p465 = scmp.lt.s32.totalorder %s463, 0
      %p466 = pnand %p465, %p464
      %p467 = pneg %p466
      %s468 = sadd.s32 %s463, 2
      %s469 = scalar_select %p467, %s468, %s463
      %s470 = ssub.s32 %s14, %s469
      %s471 = sadd.s32 %s469, 1
      %p472 = scmp.lt.s32.totalorder %s471, 0
      %s473 = ssub.s32 0, %s471
      %s474 = scalar_select %p472, %s473, %s471
      %s475 = sand.u32 %s474, 1
      %s476 = ssub.s32 0, %s475
      %s477 = scalar_select %p472, %s476, %s475
      %p478 = scmp.ne.s32.totalorder %s477, 0
      %p479 = scmp.lt.s32.totalorder %s477, 0
      %p480 = pnand %p479, %p478
      %p481 = pneg %p480
      %s482 = sadd.s32 %s477, 2
      %s483 = scalar_select %p481, %s482, %s477
      %s484 = sadd.s32 %s470, %s483
      %p485 = scmp.lt.s32.totalorder %s484, 15
      %s486 = scalar_select %p485, %s484, 15
      %s487 = smul.addr %s486, 8
      %s488 = scalar_lea.vmem %s1, %s487
      %p489 = scmp.lt.s32.totalorder %s14, 0
      %s490 = ssub.s32 0, %s14
      %s491 = scalar_select %p489, %s490, %s14
      %s492 = sand.u32 %s491, 1
      %s493 = ssub.s32 0, %s492
      %s494 = scalar_select %p489, %s493, %s492
      %p495 = scmp.ne.s32.totalorder %s494, 0
      %p496 = scmp.lt.s32.totalorder %s494, 0
      %p497 = pnand %p496, %p495
      %p498 = pneg %p497
      %s499 = sadd.s32 %s494, 2
      %s500 = scalar_select %p498, %s499, %s494
      %s501 = ssub.s32 %s14, %s500
      %s502 = sadd.s32 %s500, 1
      %p503 = scmp.lt.s32.totalorder %s502, 0
      %s504 = ssub.s32 0, %s502
      %s505 = scalar_select %p503, %s504, %s502
      %s506 = sand.u32 %s505, 1
      %s507 = ssub.s32 0, %s506
      %s508 = scalar_select %p503, %s507, %s506
      %p509 = scmp.ne.s32.totalorder %s508, 0
      %p510 = scmp.lt.s32.totalorder %s508, 0
      %p511 = pnand %p510, %p509
      %p512 = pneg %p511
      %s513 = sadd.s32 %s508, 2
      %s514 = scalar_select %p512, %s513, %s508
      %s515 = sadd.s32 %s501, %s514
      %p516 = scmp.lt.s32.totalorder %s14, 0
      %s517 = ssub.s32 0, %s14
      %s518 = scalar_select %p516, %s517, %s14
      %s519 = sand.u32 %s518, 1
      %s520 = ssub.s32 0, %s519
      %s521 = scalar_select %p516, %s520, %s519
      %p522 = scmp.ne.s32.totalorder %s521, 0
      %p523 = scmp.lt.s32.totalorder %s521, 0
      %p524 = pnand %p523, %p522
      %p525 = pneg %p524
      %s526 = sadd.s32 %s521, 2
      %s527 = scalar_select %p525, %s526, %s521
      %s528 = ssub.s32 %s14, %s527
      %s529 = sadd.s32 %s527, 1
      %p530 = scmp.lt.s32.totalorder %s529, 0
      %s531 = ssub.s32 0, %s529
      %s532 = scalar_select %p530, %s531, %s529
      %s533 = sand.u32 %s532, 1
      %s534 = ssub.s32 0, %s533
      %s535 = scalar_select %p530, %s534, %s533
      %p536 = scmp.ne.s32.totalorder %s535, 0
      %p537 = scmp.lt.s32.totalorder %s535, 0
      %p538 = pnand %p537, %p536
      %p539 = pneg %p538
      %s540 = sadd.s32 %s535, 2
      %s541 = scalar_select %p539, %s540, %s535
      %s542 = sadd.s32 %s528, %s541
      %p543 = scmp.lt.s32.totalorder %s542, 15
      %s544 = scalar_select %p543, %s542, 15
      %s545 = smul.addr %s544, 8
      %s546 = scalar_lea.vmem %s2, %s545
      %p547 = scmp.lt.s32.totalorder %s14, 0
      %s548 = ssub.s32 0, %s14
      %s549 = scalar_select %p547, %s548, %s14
      %s550 = sand.u32 %s549, 1
      %s551 = ssub.s32 0, %s550
      %s552 = scalar_select %p547, %s551, %s550
      %p553 = scmp.ne.s32.totalorder %s552, 0
      %p554 = scmp.lt.s32.totalorder %s552, 0
      %p555 = pnand %p554, %p553
      %p556 = pneg %p555
      %s557 = sadd.s32 %s552, 2
      %s558 = scalar_select %p556, %s557, %s552
      %s559 = ssub.s32 %s14, %s558
      %s560 = sadd.s32 %s558, 1
      %p561 = scmp.lt.s32.totalorder %s560, 0
      %s562 = ssub.s32 0, %s560
      %s563 = scalar_select %p561, %s562, %s560
      %s564 = sand.u32 %s563, 1
      %s565 = ssub.s32 0, %s564
      %s566 = scalar_select %p561, %s565, %s564
      %p567 = scmp.ne.s32.totalorder %s566, 0
      %p568 = scmp.lt.s32.totalorder %s566, 0
      %p569 = pnand %p568, %p567
      %p570 = pneg %p569
      %s571 = sadd.s32 %s566, 2
      %s572 = scalar_select %p570, %s571, %s566
      %s573 = sadd.s32 %s559, %s572
      %p574 = scmp.lt.s32.totalorder %s14, 15
      %s575 = scalar_select %p574, %s14, 15
      %s576 = smul.addr %s575, 8
      %s577 = scalar_lea.vmem %s3, %s576
      %v578 = vld [vmem:[%s457] sm:$0xff]
      %v579 = vld [vmem:[%s488] sm:$0xff]
      %v580 = vld [vmem:[%s546] sm:$0xff]
      %v581 = vmul.f32 %v578, 0.35355338
      %v582 = vmul.f32 %v581, %v579
      %vm583 = vcmask 523264
      %v584 = vsel %vm583, %v582, -inf
      %v585 = vrot.slane %v584, 4
      %v586 = vmax.f32 %v584, %v585
      %v587 = vrot.slane %v586, 2
      %v588 = vmax.f32 %v586, %v587
      %v589 = vrot.slane %v588, 1
      %v590 = vmax.f32 %v588, %v589
      %v591 = vsub.f32 %v582, %v590
      %v592 = vmul.f32 %v591, 1.442695
      %v593 = vpow.pop %v592
      %v594 = vsel %vm583, %v593, 0.0
      %v595 = vrot.slane %v594, 4
      %v596 = vadd.f32 %v594, %v595
      %v597 = vrot.slane %v596, 2
      %v598 = vadd.f32 %v596, %v597
      %v599 = vrot.slane %v598, 1
      %v600 = vadd.f32 %v598, %v599
      %v601 = vrcp.pop %v600
      %v602 = vmul.f32 %v593, %v601
      %v603 = vmul.f32 %v602, %v580
      %604 = vst.msk [vmem:[%s577] sm:$0xff] %vm583, %v603
      %p605 = scmp.lt.s32.totalorder %s14, 15
      %s606 = scalar_select %p605, %s14, 15
      %s607 = smul.addr %s606, 8
      %s608 = scalar_lea.vmem %s3, %s607
      // Predicated region
      $region33: #{cross_frame_attention.3} parent=31 // pred_check
        %p609 = pneg %p218
      $region34: #{cross_frame_attention.3} parent=31 // pred_check_branch
        %611 = sbr.rel (%p609) target = $region36
      $region35: #{cross_frame_attention.3} parent=31 // pred_region
        _
      $region36: #{cross_frame_attention.3} parent=31 // pred_fallthru
        _
    $region32: #{cross_frame_attention.3} parent=5 // pred_fallthru
      _
    %p612 = scmp.le.s32.totalorder 2, %s9
    // Predicated region
    $region37: #{cross_frame_attention.3} parent=5 // pred_check
      %p613 = pneg %p612
    $region38: #{cross_frame_attention.3} parent=5 // pred_check_branch
      %615 = sbr.rel (%p613) target = $region40
    $region39: #{cross_frame_attention.3} parent=5 // pred_region
      %s616 = ssub.s32 %s9, 2
      // Predicated region
      $region41: #{cross_frame_attention.3} parent=39 // pred_check
        %p617 = pneg %p224
      $region42: #{cross_frame_attention.3} parent=39 // pred_check_branch
        %619 = sbr.rel (%p617) target = $region44
      $region43: #{cross_frame_attention.3} parent=39 // pred_region
        %p620 = scmp.lt.s32.totalorder %s15, 15
        %s621 = scalar_select %p620, %s15, 15
        %s622 = smul.addr %s621, 8
        %s623 = scalar_lea.vmem %s3, %s622
      $region44: #{cross_frame_attention.3} parent=39 // pred_fallthru
        _
    $region40: #{cross_frame_attention.3} parent=5 // pred_fallthru
      _
  $region6: #{cross_frame_attention.3} parent=0 // loop_footer
    %s13 = sadd.s32 1, %s9
  $region7: #{cross_frame_attention.3} parent=0 // loop_footer_branch
    %8 = sbr.rel target = $region3
  $region8: #{cross_frame_attention.3} parent=0 // loop_exit
    _

// kernel: cross_frame_attention.2
$region0: #{cross_frame_attention.2}
  #allocation0 [shape = 'u32[]', space=smem, size = 0x4, offset = 0x4, fixed_abs, tag = 'smem constant byte address 0x4 - core index']
  #allocation1 [shape = 'u32[72,128]{1,0:T(1,128)}', space=vmem, size = 0x9000, scoped, tag = 'internal scratch']
  %s0 = inlined_call_operand.hbm [shape: f32[256,32], index: 0, kind: input, shape index: {}]
  %s1 = inlined_call_operand.hbm [shape: f32[32,96], index: 1, kind: input, shape index: {}]
  %s2 = inlined_call_operand.vmem [shape: f32[1,96], index: 2, kind: input, shape index: {}]
  %s3 = inlined_call_operand.vmem [shape: f32[256,96], index: 3, kind: output, shape index: {}]
  %s4 = sld [smem:[#allocation0]]
  $region30: #{cross_frame_attention.2} parent=0
    _
  %s6 = ssub.s32 1, %s4
  %s7 = scalar_select 0, %s6, %s4
  $region1: #{cross_frame_attention.2} parent=0
    #allocation2 [shape = 'u8[131072]{0}', space=vmem, size = 0x20000, scoped, tag = 'input window, operand 0, single buffered']
    #allocation3 [shape = 's32[1]{0}', space=sflag, size = 0x4, scoped, tag = 'scoped memory for cross_frame_attention.2']
    #allocation4 [shape = 'u8[16384]{0}', space=vmem, size = 0x4000, scoped, tag = 'input window, operand 1, single buffered']
    #allocation5 [shape = 's32[1]{0}', space=sflag, size = 0x4, scoped, tag = 'scoped memory for cross_frame_attention.2']
    %8 = vsyncpa [#allocation3], 0
    %9 = vsyncpa [#allocation5], 0
    // Predicated region
    $region2: #{cross_frame_attention.2} parent=1 // pred_check
      _
    $region3: #{cross_frame_attention.2} parent=1 // pred_check_branch
      %11 = sbr.rel (0) target = $region5
    $region4: #{cross_frame_attention.2} parent=1 // pred_region
      %13 = vsyncadd [#allocation3], 0
      %s14 = sshll.u32 %s0, 4
      %s15 = int_to_ptr.hbm [resolvable:$true] %s14
      %s16 = sshll.u32 [#allocation2], 4
      %s17 = int_to_ptr.vmem [resolvable:$true] %s16
      %22 = dma.hbm_to_vmem [thread:$0]  %s15, 4096, %s17, [#allocation3], 128, 128, 8
    $region5: #{cross_frame_attention.2} parent=1 // pred_fallthru
      _
    // Predicated region
    $region6: #{cross_frame_attention.2} parent=1 // pred_check
      _
    $region7: #{cross_frame_attention.2} parent=1 // pred_check_branch
      %24 = sbr.rel (0) target = $region9
    $region8: #{cross_frame_attention.2} parent=1 // pred_region
      %26 = vsyncadd [#allocation5], 0
      %s27 = sshll.u32 %s1, 4
      %s28 = int_to_ptr.hbm [resolvable:$true] %s27
      %s29 = sshll.u32 [#allocation4], 4
      %s30 = int_to_ptr.vmem [resolvable:$true] %s29
      %35 = dma.hbm_to_vmem [thread:$0]  %s28, 512, %s30, [#allocation5], 128, 128, 8
    $region9: #{cross_frame_attention.2} parent=1 // pred_fallthru
      _
    // Predicated region
    $region10: #{cross_frame_attention.2} parent=1 // pred_check
      _
    $region11: #{cross_frame_attention.2} parent=1 // pred_check_branch
      %37 = sbr.rel (0) target = $region13
    $region12: #{cross_frame_attention.2} parent=1 // pred_region
      _
    $region13: #{cross_frame_attention.2} parent=1 // pred_fallthru
      _
    // Predicated region
    $region14: #{cross_frame_attention.2} parent=1 // pred_check
      _
    $region15: #{cross_frame_attention.2} parent=1 // pred_check_branch
      %39 = sbr.rel (0) target = $region17
    $region16: #{cross_frame_attention.2} parent=1 // pred_region
      %41 = dma.done [#allocation3], 4096
    $region17: #{cross_frame_attention.2} parent=1 // pred_fallthru
      _
    // Predicated region
    $region18: #{cross_frame_attention.2} parent=1 // pred_check
      _
    $region19: #{cross_frame_attention.2} parent=1 // pred_check_branch
      %43 = sbr.rel (0) target = $region21
    $region20: #{cross_frame_attention.2} parent=1 // pred_region
      %45 = dma.done [#allocation5], 512
    $region21: #{cross_frame_attention.2} parent=1 // pred_fallthru
      _
    %v46 = vld [vmem:[#allocation2] sm:$0xff]
    %v47 = vld [vmem:[#allocation2 + $0x8] sm:$0xff]
    %v48 = vld [vmem:[#allocation2 + $0x10] sm:$0xff]
    %v49 = vld [vmem:[#allocation2 + $0x18] sm:$0xff]
    %v50 = vld [vmem:[#allocation2 + $0x20] sm:$0xff]
    %v51 = vld [vmem:[#allocation2 + $0x28] sm:$0xff]
    %v52 = vld [vmem:[#allocation2 + $0x30] sm:$0xff]
    %v53 = vld [vmem:[#allocation2 + $0x38] sm:$0xff]
    %v54 = vld [vmem:[#allocation2 + $0x40] sm:$0xff]
    %v55 = vld [vmem:[#allocation2 + $0x48] sm:$0xff]
    %v56 = vld [vmem:[#allocation2 + $0x50] sm:$0xff]
    %v57 = vld [vmem:[#allocation2 + $0x58] sm:$0xff]
    %v58 = vld [vmem:[#allocation2 + $0x60] sm:$0xff]
    %v59 = vld [vmem:[#allocation2 + $0x68] sm:$0xff]
    %v60 = vld [vmem:[#allocation2 + $0x70] sm:$0xff]
    %v61 = vld [vmem:[#allocation2 + $0x78] sm:$0xff]
    %v62 = vld [vmem:[#allocation2 + $0x80] sm:$0xff]
    %v63 = vld [vmem:[#allocation2 + $0x88] sm:$0xff]
    %v64 = vld [vmem:[#allocation2 + $0x90] sm:$0xff]
    %v65 = vld [vmem:[#allocation2 + $0x98] sm:$0xff]
    %v66 = vld [vmem:[#allocation2 + $0xa0] sm:$0xff]
    %v67 = vld [vmem:[#allocation2 + $0xa8] sm:$0xff]
    %v68 = vld [vmem:[#allocation2 + $0xb0] sm:$0xff]
    %v69 = vld [vmem:[#allocation2 + $0xb8] sm:$0xff]
    %v70 = vld [vmem:[#allocation2 + $0xc0] sm:$0xff]
    %v71 = vld [vmem:[#allocation2 + $0xc8] sm:$0xff]
    %v72 = vld [vmem:[#allocation2 + $0xd0] sm:$0xff]
    %v73 = vld [vmem:[#allocation2 + $0xd8] sm:$0xff]
    %v74 = vld [vmem:[#allocation2 + $0xe0] sm:$0xff]
    %v75 = vld [vmem:[#allocation2 + $0xe8] sm:$0xff]
    %v76 = vld [vmem:[#allocation2 + $0xf0] sm:$0xff]
    %v77 = vld [vmem:[#allocation2 + $0xf8] sm:$0xff]
    %v78 = vld [vmem:[#allocation4] sm:$0xff]
    %v79 = vld [vmem:[#allocation4 + $0x8] sm:$0xff]
    %v80 = vld [vmem:[#allocation4 + $0x10] sm:$0xff]
    %v81 = vld [vmem:[#allocation4 + $0x18] sm:$0xff]
    %v82 = vld [vmem:[%s2] sm:$0x1]
    %v84 = vperm.slane %v82, 0
    %vm86 = vcmask 261120
    %v88 = vsel %vm86, %v46, 0
    %v91 = vsel %vm86, %v47, 0
    %v94 = vsel %vm86, %v48, 0
    %v97 = vsel %vm86, %v49, 0
    %v100 = vsel %vm86, %v50, 0
    %v103 = vsel %vm86, %v51, 0
    %v106 = vsel %vm86, %v52, 0
    %v109 = vsel %vm86, %v53, 0
    %v112 = vsel %vm86, %v54, 0
    %v115 = vsel %vm86, %v55, 0
    %v118 = vsel %vm86, %v56, 0
    %v121 = vsel %vm86, %v57, 0
    %v124 = vsel %vm86, %v58, 0
    %v127 = vsel %vm86, %v59, 0
    %v130 = vsel %vm86, %v60, 0
    %v133 = vsel %vm86, %v61, 0
    %v136 = vsel %vm86, %v62, 0
    %v139 = vsel %vm86, %v63, 0
    %v142 = vsel %vm86, %v64, 0
    %v145 = vsel %vm86, %v65, 0
    %v148 = vsel %vm86, %v66, 0
    %v151 = vsel %vm86, %v67, 0
    %v154 = vsel %vm86, %v68, 0
    %v157 = vsel %vm86, %v69, 0
    %v160 = vsel %vm86, %v70, 0
    %v163 = vsel %vm86, %v71, 0
    %v166 = vsel %vm86, %v72, 0
    %v169 = vsel %vm86, %v73, 0
    %v172 = vsel %vm86, %v74, 0
    %v175 = vsel %vm86, %v75, 0
    %v178 = vsel %vm86, %v76, 0
    %v181 = vsel %vm86, %v77, 0
    %183 = vmatpush.msra.mxu0 0.0
    %184 = vmatpush.msra.mxu0 0.0
    %185 = vmatpush.msra.mxu0 0.0
    %186 = vmatpush.msra.mxu0 0.0
    %187 = vmatpush.msra.mxu0 0.0
    %188 = vmatpush.msra.mxu0 0.0
    %189 = vmatpush.msra.mxu0 0.0
    %190 = vmatpush.msra.mxu0 0.0
    %191 = vmatpush.msra.mxu0 0.0
    %192 = vmatpush.msra.mxu0 0.0
    %193 = vmatpush.msra.mxu0 0.0
    %194 = vmatpush.msra.mxu0 0.0
    %195 = vmatpush.msra.mxu0 %v81
    %196 = vmatpush.msra.mxu0 %v80
    %197 = vmatpush.msra.mxu0 %v79
    %198 = vmatpush.msra.mxu0 %v78
    %199 = vmatmul.f32.gmra.mxu0 %v88
    %v200 = vpop.f32.mrf.mxu0
    %v201 = vadd.f32 %v84, %v200
    %202 = vmatmul.f32.gmra.mxu0 %v91
    %v203 = vpop.f32.mrf.mxu0
    %v204 = vadd.f32 %v84, %v203
    %205 = vmatmul.f32.gmra.mxu0 %v94
    %v206 = vpop.f32.mrf.mxu0
    %v207 = vadd.f32 %v84, %v206
    %208 = vmatmul.f32.gmra.mxu0 %v97
    %v209 = vpop.f32.mrf.mxu0
    %v210 = vadd.f32 %v84, %v209
    %211 = vmatmul.f32.gmra.mxu0 %v100
    %v212 = vpop.f32.mrf.mxu0
    %v213 = vadd.f32 %v84, %v212
    %214 = vmatmul.f32.gmra.mxu0 %v103
    %v215 = vpop.f32.mrf.mxu0
    %v216 = vadd.f32 %v84, %v215
    %217 = vmatmul.f32.gmra.mxu0 %v106
    %v218 = vpop.f32.mrf.mxu0
    %v219 = vadd.f32 %v84, %v218
    %220 = vmatmul.f32.gmra.mxu0 %v109
    %v221 = vpop.f32.mrf.mxu0
    %v222 = vadd.f32 %v84, %v221
    %223 = vmatmul.f32.gmra.mxu0 %v112
    %v224 = vpop.f32.mrf.mxu0
    %v225 = vadd.f32 %v84, %v224
    %226 = vmatmul.f32.gmra.mxu0 %v115
    %v227 = vpop.f32.mrf.mxu0
    %v228 = vadd.f32 %v84, %v227
    %229 = vmatmul.f32.gmra.mxu0 %v118
    %v230 = vpop.f32.mrf.mxu0
    %v231 = vadd.f32 %v84, %v230
    %232 = vmatmul.f32.gmra.mxu0 %v121
    %v233 = vpop.f32.mrf.mxu0
    %v234 = vadd.f32 %v84, %v233
    %235 = vmatmul.f32.gmra.mxu0 %v124
    %v236 = vpop.f32.mrf.mxu0
    %v237 = vadd.f32 %v84, %v236
    %238 = vmatmul.f32.gmra.mxu0 %v127
    %v239 = vpop.f32.mrf.mxu0
    %v240 = vadd.f32 %v84, %v239
    %241 = vmatmul.f32.gmra.mxu0 %v130
    %v242 = vpop.f32.mrf.mxu0
    %v243 = vadd.f32 %v84, %v242
    %244 = vmatmul.f32.gmra.mxu0 %v133
    %v245 = vpop.f32.mrf.mxu0
    %v246 = vadd.f32 %v84, %v245
    %247 = vmatmul.f32.gmra.mxu0 %v136
    %v248 = vpop.f32.mrf.mxu0
    %v249 = vadd.f32 %v84, %v248
    %250 = vmatmul.f32.gmra.mxu0 %v139
    %v251 = vpop.f32.mrf.mxu0
    %v252 = vadd.f32 %v84, %v251
    %253 = vmatmul.f32.gmra.mxu0 %v142
    %v254 = vpop.f32.mrf.mxu0
    %v255 = vadd.f32 %v84, %v254
    %256 = vmatmul.f32.gmra.mxu0 %v145
    %v257 = vpop.f32.mrf.mxu0
    %v258 = vadd.f32 %v84, %v257
    %259 = vmatmul.f32.gmra.mxu0 %v148
    %v260 = vpop.f32.mrf.mxu0
    %v261 = vadd.f32 %v84, %v260
    %262 = vmatmul.f32.gmra.mxu0 %v151
    %v263 = vpop.f32.mrf.mxu0
    %v264 = vadd.f32 %v84, %v263
    %265 = vmatmul.f32.gmra.mxu0 %v154
    %v266 = vpop.f32.mrf.mxu0
    %v267 = vadd.f32 %v84, %v266
    %268 = vmatmul.f32.gmra.mxu0 %v157
    %v269 = vpop.f32.mrf.mxu0
    %v270 = vadd.f32 %v84, %v269
    %271 = vmatmul.f32.gmra.mxu0 %v160
    %v272 = vpop.f32.mrf.mxu0
    %v273 = vadd.f32 %v84, %v272
    %274 = vmatmul.f32.gmra.mxu0 %v163
    %v275 = vpop.f32.mrf.mxu0
    %v276 = vadd.f32 %v84, %v275
    %277 = vmatmul.f32.gmra.mxu0 %v166
    %v278 = vpop.f32.mrf.mxu0
    %v279 = vadd.f32 %v84, %v278
    %280 = vmatmul.f32.gmra.mxu0 %v169
    %v281 = vpop.f32.mrf.mxu0
    %v282 = vadd.f32 %v84, %v281
    %283 = vmatmul.f32.gmra.mxu0 %v172
    %v284 = vpop.f32.mrf.mxu0
    %v285 = vadd.f32 %v84, %v284
    %286 = vmatmul.f32.gmra.mxu0 %v175
    %v287 = vpop.f32.mrf.mxu0
    %v288 = vadd.f32 %v84, %v287
    %289 = vmatmul.f32.gmra.mxu0 %v178
    %v290 = vpop.f32.mrf.mxu0
    %v291 = vadd.f32 %v84, %v290
    %292 = vmatmul.f32.gmra.mxu0 %v181
    %v293 = vpop.f32.mrf.mxu0
    %v294 = vadd.f32 %v84, %v293
    %295 = vdwg.mxu0
    %vm296 = vcmask 785408
    %297 = vst.msk [vmem:[%s3] sm:$0xff] %vm296, %v201
    %298 = vst.msk [vmem:[%s3 + $0x8] sm:$0xff] %vm296, %v204
    %299 = vst.msk [vmem:[%s3 + $0x10] sm:$0xff] %vm296, %v207
    %300 = vst.msk [vmem:[%s3 + $0x18] sm:$0xff] %vm296, %v210
    %301 = vst.msk [vmem:[%s3 + $0x20] sm:$0xff] %vm296, %v213
    %302 = vst.msk [vmem:[%s3 + $0x28] sm:$0xff] %vm296, %v216
    %303 = vst.msk [vmem:[%s3 + $0x30] sm:$0xff] %vm296, %v219
    %304 = vst.msk [vmem:[%s3 + $0x38] sm:$0xff] %vm296, %v222
    %305 = vst.msk [vmem:[%s3 + $0x40] sm:$0xff] %vm296, %v225
    %306 = vst.msk [vmem:[%s3 + $0x48] sm:$0xff] %vm296, %v228
    %307 = vst.msk [vmem:[%s3 + $0x50] sm:$0xff] %vm296, %v231
    %308 = vst.msk [vmem:[%s3 + $0x58] sm:$0xff] %vm296, %v234
    %309 = vst.msk [vmem:[%s3 + $0x60] sm:$0xff] %vm296, %v237
    %310 = vst.msk [vmem:[%s3 + $0x68] sm:$0xff] %vm296, %v240
    %311 = vst.msk [vmem:[%s3 + $0x70] sm:$0xff] %vm296, %v243
    %312 = vst.msk [vmem:[%s3 + $0x78] sm:$0xff] %vm296, %v246
    %313 = vst.msk [vmem:[%s3 + $0x80] sm:$0xff] %vm296, %v249
    %314 = vst.msk [vmem:[%s3 + $0x88] sm:$0xff] %vm296, %v252
    %315 = vst.msk [vmem:[%s3 + $0x90] sm:$0xff] %vm296, %v255
    %316 = vst.msk [vmem:[%s3 + $0x98] sm:$0xff] %vm296, %v258
    %317 = vst.msk [vmem:[%s3 + $0xa0] sm:$0xff] %vm296, %v261
    %318 = vst.msk [vmem:[%s3 + $0xa8] sm:$0xff] %vm296, %v264
    %319 = vst.msk [vmem:[%s3 + $0xb0] sm:$0xff] %vm296, %v267
    %320 = vst.msk [vmem:[%s3 + $0xb8] sm:$0xff] %vm296, %v270
    %321 = vst.msk [vmem:[%s3 + $0xc0] sm:$0xff] %vm296, %v273
    %322 = vst.msk [vmem:[%s3 + $0xc8] sm:$0xff] %vm296, %v276
    %323 = vst.msk [vmem:[%s3 + $0xd0] sm:$0xff] %vm296, %v279
    %324 = vst.msk [vmem:[%s3 + $0xd8] sm:$0xff] %vm296, %v282
    %325 = vst.msk [vmem:[%s3 + $0xe0] sm:$0xff] %vm296, %v285
    %326 = vst.msk [vmem:[%s3 + $0xe8] sm:$0xff] %vm296, %v288
    %327 = vst.msk [vmem:[%s3 + $0xf0] sm:$0xff] %vm296, %v291
    %328 = vst.msk [vmem:[%s3 + $0xf8] sm:$0xff] %vm296, %v294
    // Predicated region
    $region22: #{cross_frame_attention.2} parent=1 // pred_check
      _
    $region23: #{cross_frame_attention.2} parent=1 // pred_check_branch
      %330 = sbr.rel (0) target = $region25
    $region24: #{cross_frame_attention.2} parent=1 // pred_region
      _
    $region25: #{cross_frame_attention.2} parent=1 // pred_fallthru
      _
    // Predicated region
    $region26: #{cross_frame_attention.2} parent=1 // pred_check
      _
    $region27: #{cross_frame_attention.2} parent=1 // pred_check_branch
      %332 = sbr.rel (0) target = $region29
    $region28: #{cross_frame_attention.2} parent=1 // pred_region
      _
    $region29: #{cross_frame_attention.2} parent=1 // pred_fallthru
      _
    %333 = vsyncpa [#allocation3], 1
    %334 = vsyncpa [#allocation5], 1

</llo_original>
